<compile_context>
chip_gen: v7x
topology: tpu7x:2x2x1
jax: 0.10.0
libtpu: 0.0.40
codegen_flags: <defaults>
</compile_context>

<pallas_src>
import jax
import jax.numpy as jnp
import numpy as np
from jax.experimental import pallas as pl
from jax.experimental.pallas import tpu as pltpu


# ---------------------------------------------------------------------------
# Packed parameter slab layout: single f32 (56, 128) buffer (zero padded).
# All multi-row views start on an 8-sublane boundary.
#   rows  0:16, cols 0:20  -> W1^T (16, 20)
#   row  16,    cols 0:20  -> b1   (20,)
#   rows 24:44, cols 0:40  -> W2^T (20, 40)
#   row  48,    cols 0:40  -> b2   (40,)
#   row  49,    cols 0:40  -> W3   (as a row, 40)
#   row  50,    col  0     -> b3   (scalar)
# ---------------------------------------------------------------------------
_SLAB_SHAPE = (56, 128)


def _tail_from_h1(h1, p_ref, o_ref):
    """Shared post-layer-1 computation: global norm -> tanh -> L2 -> tanh -> L3."""
    b2 = p_ref[48:49, 0:40]                          # (1, 40)
    w2 = p_ref[24:44, 0:40]                          # (20, 40), 8-aligned start
    w3r = p_ref[49:50, 0:40]                         # (1, 40)
    b3 = p_ref[50:51, 0:1]                           # (1, 1)

    # Global normalization statistics (two-pass; robust against cancellation).
    # PyTorch sums over ALL elements (including batch) and divides by 20.
    x_avg = jnp.sum(h1) / jnp.float32(20.0)
    xm = h1 - x_avg
    x_std = jnp.sum(xm * xm) / jnp.float32(20.0)
    inv = 1.0 / (jnp.sqrt(x_std) + jnp.float32(1e-07))   # exact scalar reciprocal
    h1t = jnp.tanh(xm * inv)                              # (B, 20)

    # linear2 on the MXU + tanh: (B,20) @ (20,40) + (1,40)
    h2 = jnp.tanh(jnp.dot(h1t, w2, preferred_element_type=jnp.float32) + b2)

    # linear3 (out_features = 1) on the VPU/XLU: multiply + lane reduce.
    out = jnp.sum(h2 * w3r, axis=-1, keepdims=True) + b3   # (B, 1)
    o_ref[...] = out.astype(o_ref.dtype)


def _value_net_onehot_kernel(ids_ref, p_ref, o_ref):
    """Fast path: state ids in SMEM (scalar prefetch); layer 1 is a row gather."""
    b1 = p_ref[16:17, 0:20]                          # (1, 20)
    n_rows = o_ref.shape[0]
    # x is one-hot over 16 states, so x @ W1^T is just row ids[b] of W1^T.
    rows = [p_ref[pl.ds(ids_ref[b], 1), 0:20] for b in range(n_rows)]   # each (1, 20)
    h1 = jnp.concatenate(rows, axis=0) + b1          # (B, 20)
    _tail_from_h1(h1, p_ref, o_ref)


def _value_net_general_kernel(x_ref, p_ref, o_ref):
    """Fallback path for arbitrary (non-one-hot) inputs: layer 1 on the MXU."""
    x = x_ref[...]                                   # (B, 16) f32
    w1 = p_ref[0:16, 0:20]                           # (16, 20)
    b1 = p_ref[16:17, 0:20]                          # (1, 20)
    h1 = jnp.dot(x, w1, preferred_element_type=jnp.float32) + b1   # (B, 20)
    _tail_from_h1(h1, p_ref, o_ref)


@jax.jit
def value_net_forward_onehot(state_ids, packed_params):
    """state_ids: (B,) int32 Frozen Lake states, packed_params: (56,128) f32 slab.

    Returns (B, 1) float32 (matches .view(-1, 1)). No x DMA, no layer-1 matmul.
    """
    B = state_ids.shape[0]
    grid_spec = pltpu.PrefetchScalarGridSpec(
        num_scalar_prefetch=1,
        grid=(1,),
        in_specs=[pl.BlockSpec(_SLAB_SHAPE, lambda i, ids: (0, 0))],
        out_specs=pl.BlockSpec((B, 1), lambda i, ids: (0, 0)),
    )
    return pl.pallas_call(
        _value_net_onehot_kernel,
        out_shape=jax.ShapeDtypeStruct((B, 1), jnp.float32),
        grid_spec=grid_spec,
        compiler_params=pltpu.CompilerParams(dimension_semantics=("arbitrary",)),
    )(state_ids, packed_params)


@jax.jit
def value_net_forward(x, packed_params):
    """General path. x: (B, 16) float32, packed_params: (56, 128) float32 slab."""
    B = x.shape[0]
    vmem = pl.BlockSpec(memory_space=pltpu.MemorySpace.VMEM)
    return pl.pallas_call(
        _value_net_general_kernel,
        out_shape=jax.ShapeDtypeStruct((B, 1), jnp.float32),
        in_specs=[vmem, vmem],
        out_specs=vmem,
    )(x, packed_params)


def init_params(key):
    """Deterministic init mimicking torch.nn.Linear default (U(-1/sqrt(fan_in), +))."""
    def linear_init(k, out_f, in_f):
        kw, kb = jax.random.split(k)
        bound = 1.0 / np.sqrt(in_f)
        w = jax.random.uniform(kw, (out_f, in_f), jnp.float32, -bound, bound)
        b = jax.random.uniform(kb, (out_f,), jnp.float32, -bound, bound)
        return w, b

    k1, k2, k3 = jax.random.split(key, 3)
    w1, b1 = linear_init(k1, 20, 16)
    w2, b2 = linear_init(k2, 40, 20)
    w3, b3 = linear_init(k3, 1, 40)
    return (w1, b1, w2, b2, w3, b3)


def pack_params(params):
    """One-time packing: pre-transpose weights and lay everything into one slab,
    with every multi-row MXU operand starting on an 8-sublane boundary."""
    w1, b1, w2, b2, w3, b3 = (np.asarray(p, dtype=np.float32) for p in params)
    slab = np.zeros(_SLAB_SHAPE, dtype=np.float32)
    slab[0:16, 0:20] = w1.T          # (16, 20)  rows 0:16  (aligned)
    slab[16, 0:20] = b1              # (20,)     row  16    (aligned)
    slab[24:44, 0:40] = w2.T         # (20, 40)  rows 24:44 (aligned start)
    slab[48, 0:40] = b2              # (40,)     row  48    (aligned)
    slab[49, 0:40] = w3.reshape(-1)  # (40,)     row  49
    slab[50, 0] = b3[0]              # scalar    row  50
    return jnp.asarray(slab)


def value_net_ref(x, params):
    """Pure-JAX reference reproducing the PyTorch forward exactly, for verification."""
    w1, b1, w2, b2, w3, b3 = params
    h1 = x @ w1.T + b1
    x_avg = jnp.sum(h1) / 20.0
    xm = h1 - x_avg
    x_std = jnp.sum(xm ** 2) / 20.0
    x_norm = xm / (jnp.sqrt(x_std) + 1e-07)
    h1t = jnp.tanh(x_norm)
    h2 = jnp.tanh(h1t @ w2.T + b2)
    out = h2 @ w3.T + b3
    return out.reshape(-1, 1)


if __name__ == "__main__":
    key = jax.random.PRNGKey(0)
    k_params, _ = jax.random.split(key)

    raw_params = init_params(k_params)
    packed = pack_params(raw_params)     # one-time, outside the hot loop

    # Frozen Lake state is a one-hot over 16 states; use batch=2.
    B = 2
    state_ids = jnp.array([3, 11], dtype=jnp.int32)
    x = jax.nn.one_hot(state_ids, 16, dtype=jnp.float32)  # (2, 16)

    ref = value_net_ref(x, raw_params)

    # Fast path (scalar-prefetched one-hot ids -> row gather layer 1).
    out_fast = jax.block_until_ready(value_net_forward_onehot(state_ids, packed))
    # General fallback path (arbitrary x -> MXU layer 1).
    out_gen = jax.block_until_ready(value_net_forward(x, packed))

    assert out_fast.shape == (B, 1), out_fast.shape
    assert out_gen.shape == (B, 1), out_gen.shape
    np.testing.assert_allclose(np.asarray(out_fast), np.asarray(ref),
                               rtol=1e-5, atol=1e-5)
    np.testing.assert_allclose(np.asarray(out_gen), np.asarray(ref),
                               rtol=1e-5, atol=1e-5)
    print("KERNEL_OK")
</pallas_src>

<mosaic_0001>
module attributes {stable_mosaic.version = 11 : i64} {
  func.func @_value_net_onehot_kernel(%arg0: i32, %arg1: memref<2xi32, #tpu.memory_space<smem>>, %arg2: memref<56x128xf32, #tpu.memory_space<vmem>>, %arg3: memref<2x1xf32, #tpu.memory_space<vmem>>) attributes {dimension_semantics = [#tpu.dimension_semantics<arbitrary>], iteration_bounds = array<i64: 1>, scalar_prefetch = 1 : i64, scratch_operands = 0 : i64, tpu.core_type = #tpu.core_type<tc>, window_params = [{pipeline_mode = #tpu.pipeline_mode<synchronous>, transform_indices = @transform_0, window_bounds = array<i64: 56, 128>}, {pipeline_mode = #tpu.pipeline_mode<synchronous>, transform_indices = @transform_1, window_bounds = array<i64: 2, 1>}]} {
    %c16 = arith.constant 16 : index
    %c0 = arith.constant 0 : index
    %0 = vector.load %arg2[%c16, %c0] : memref<56x128xf32, #tpu.memory_space<vmem>>, vector<1x20xf32>
    %c0_0 = arith.constant 0 : index
    %1 = memref.load %arg1[%c0_0] : memref<2xi32, #tpu.memory_space<smem>>
    %2 = arith.index_cast %1 : i32 to index
    %c0_1 = arith.constant 0 : index
    %3 = vector.load %arg2[%2, %c0_1] : memref<56x128xf32, #tpu.memory_space<vmem>>, vector<1x20xf32>
    %c1 = arith.constant 1 : index
    %4 = memref.load %arg1[%c1] : memref<2xi32, #tpu.memory_space<smem>>
    %5 = arith.index_cast %4 : i32 to index
    %c0_2 = arith.constant 0 : index
    %6 = vector.load %arg2[%5, %c0_2] : memref<56x128xf32, #tpu.memory_space<vmem>>, vector<1x20xf32>
    %7 = tpu.concatenate %3, %6 in 0 : vector<1x20xf32>, vector<1x20xf32> -> vector<2x20xf32>
    %8 = vector.broadcast %0 : vector<1x20xf32> to vector<2x20xf32>
    %9 = arith.addf %7, %8 : vector<2x20xf32>
    %c48 = arith.constant 48 : index
    %c0_3 = arith.constant 0 : index
    %10 = vector.load %arg2[%c48, %c0_3] : memref<56x128xf32, #tpu.memory_space<vmem>>, vector<1x40xf32>
    %c24 = arith.constant 24 : index
    %c0_4 = arith.constant 0 : index
    %11 = vector.load %arg2[%c24, %c0_4] : memref<56x128xf32, #tpu.memory_space<vmem>>, vector<20x40xf32>
    %c49 = arith.constant 49 : index
    %c0_5 = arith.constant 0 : index
    %12 = vector.load %arg2[%c49, %c0_5] : memref<56x128xf32, #tpu.memory_space<vmem>>, vector<1x40xf32>
    %c50 = arith.constant 50 : index
    %c0_6 = arith.constant 0 : index
    %13 = vector.load %arg2[%c50, %c0_6] : memref<56x128xf32, #tpu.memory_space<vmem>>, vector<1x1xf32>
    %14 = vector.shape_cast %9 : vector<2x20xf32> to vector<1x2x20xf32>
    %cst = arith.constant dense<0.000000e+00> : vector<1xf32>
    %15 = vector.multi_reduction <add>, %14, %cst [1, 2] : vector<1x2x20xf32> to vector<1xf32>
    %16 = vector.shape_cast %15 : vector<1xf32> to vector<1x1x1xf32>
    %17 = vector.extract %16[0, 0, 0] : f32 from vector<1x1x1xf32>
    %cst_7 = arith.constant 2.000000e+01 : f32
    %18 = arith.divf %17, %cst_7 : f32
    %19 = vector.broadcast %18 : f32 to vector<2x20xf32>
    %20 = arith.subf %9, %19 : vector<2x20xf32>
    %21 = arith.mulf %20, %20 : vector<2x20xf32>
    %22 = vector.shape_cast %21 : vector<2x20xf32> to vector<1x2x20xf32>
    %cst_8 = arith.constant dense<0.000000e+00> : vector<1xf32>
    %23 = vector.multi_reduction <add>, %22, %cst_8 [1, 2] : vector<1x2x20xf32> to vector<1xf32>
    %24 = vector.shape_cast %23 : vector<1xf32> to vector<1x1x1xf32>
    %25 = vector.extract %24[0, 0, 0] : f32 from vector<1x1x1xf32>
    %cst_9 = arith.constant 2.000000e+01 : f32
    %26 = arith.divf %25, %cst_9 : f32
    %27 = math.sqrt %26 : f32
    %cst_10 = arith.constant 1.000000e-07 : f32
    %28 = arith.addf %27, %cst_10 : f32
    %cst_11 = arith.constant 1.000000e+00 : f32
    %29 = arith.divf %cst_11, %28 : f32
    %30 = vector.broadcast %29 : f32 to vector<2x20xf32>
    %31 = arith.mulf %20, %30 : vector<2x20xf32>
    %32 = math.tanh %31 : vector<2x20xf32>
    %cst_12 = arith.constant dense<0.000000e+00> : vector<2x40xf32>
    %33 = tpu.matmul %32, %11, %cst_12 {dimension_numbers = #tpu.dot_dimension_numbers<[1], [0], [0], [1], [0, 0, 1, 1], [], []>} : vector<2x20xf32>, vector<20x40xf32>, vector<2x40xf32> -> vector<2x40xf32>
    %34 = vector.broadcast %10 : vector<1x40xf32> to vector<2x40xf32>
    %35 = arith.addf %33, %34 : vector<2x40xf32>
    %36 = math.tanh %35 : vector<2x40xf32>
    %37 = vector.broadcast %12 : vector<1x40xf32> to vector<2x40xf32>
    %38 = arith.mulf %36, %37 : vector<2x40xf32>
    %cst_13 = arith.constant dense<0.000000e+00> : vector<2xf32>
    %39 = vector.multi_reduction <add>, %38, %cst_13 [1] : vector<2x40xf32> to vector<2xf32>
    %40 = vector.shape_cast %39 : vector<2xf32> to vector<2x1xf32>
    %41 = vector.broadcast %13 : vector<1x1xf32> to vector<2x1xf32>
    %42 = arith.addf %40, %41 : vector<2x1xf32>
    %c0_14 = arith.constant 0 : index
    %c0_15 = arith.constant 0 : index
    %43 = vector.load %arg3[%c0_14, %c0_15] : memref<2x1xf32, #tpu.memory_space<vmem>>, vector<2x1xf32>
    tpu.vector_store %arg3[%c0_14, %c0_15], %42 {strides = array<i32>} : memref<2x1xf32, #tpu.memory_space<vmem>>, vector<2x1xf32>,
    return
  }
  func.func @transform_0(%arg0: i32, %arg1: memref<2xi32, #tpu.memory_space<smem>>) -> (i32, i32) {
    %c0_i32 = arith.constant 0 : i32
    %c0_i32_0 = arith.constant 0 : i32
    %c0_i32_1 = arith.constant 0 : i32
    return %c0_i32, %c0_i32_0 : i32, i32
  }
  func.func @transform_1(%arg0: i32, %arg1: memref<2xi32, #tpu.memory_space<smem>>) -> (i32, i32) {
    %c0_i32 = arith.constant 0 : i32
    %c0_i32_0 = arith.constant 0 : i32
    %c0_i32_1 = arith.constant 0 : i32
    return %c0_i32, %c0_i32_0 : i32, i32
  }
}

</mosaic_0001>

<llo_original>
// kernel: value_net_forward_onehot.1
$region0: #{value_net_forward_onehot.1}
  #allocation0 [shape = 'u32[]', space=smem, size = 0x4, offset = 0x4, fixed_abs, tag = 'smem constant byte address 0x4 - core index']
  #allocation1 [shape = 'u32[144,128]{1,0:T(1,128)}', space=vmem, size = 0x12000, scoped, tag = 'internal scratch']
  #allocation2 [shape = 's32[1]{0}', space=sflag, size = 0x4, scoped, tag = 'scoped memory for value_net_forward_onehot.1']
  #allocation3 [shape = 'u8[512]{0}', space=smem, size = 0x200, scoped, tag = 'prefetched SMEM operand 0']
  %s0 = inlined_call_operand.hbm [shape: s32[2], index: 0, kind: input, shape index: {}]
  %s1 = inlined_call_operand.hbm [shape: f32[56,128], index: 1, kind: input, shape index: {}]
  %s2 = inlined_call_operand.vmem [shape: f32[2,1], index: 2, kind: output, shape index: {}]
  %s3 = sld [smem:[#allocation0]]
  $region18: #{value_net_forward_onehot.1} parent=0
    _
  %s5 = ssub.s32 1, %s3
  %s6 = scalar_select 0, %s5, %s3
  %8 = dma.hbm_to_smem %s0, 16, [#allocation3], [#allocation2]
  %9 = dma.done [#allocation2], 16
  %10 = sfence
  $region1: #{value_net_forward_onehot.1} parent=0
    #allocation4 [shape = 'u8[28672]{0}', space=vmem, size = 0x7000, scoped, tag = 'input window, operand 1, single buffered']
    #allocation5 [shape = 's32[1]{0}', space=sflag, size = 0x4, scoped, tag = 'scoped memory for value_net_forward_onehot.1']
    %11 = vsyncpa [#allocation5], 0
    // Predicated region
    $region2: #{value_net_forward_onehot.1} parent=1 // pred_check
      _
    $region3: #{value_net_forward_onehot.1} parent=1 // pred_check_branch
      %13 = sbr.rel (0) target = $region5
    $region4: #{value_net_forward_onehot.1} parent=1 // pred_region
      %s15 = ssub.s32 896, 896
      %16 = vsyncadd [#allocation5], %s15
      %s17 = sshll.u32 [#allocation4], 4
      %s18 = int_to_ptr.vmem [resolvable:$true] %s17
      %23 = dma.hbm_to_vmem [thread:$0]  %s1, 896, %s18, [#allocation5], 128, 128, 8
    $region5: #{value_net_forward_onehot.1} parent=1 // pred_fallthru
      _
    // Predicated region
    $region6: #{value_net_forward_onehot.1} parent=1 // pred_check
      _
    $region7: #{value_net_forward_onehot.1} parent=1 // pred_check_branch
      %25 = sbr.rel (0) target = $region9
    $region8: #{value_net_forward_onehot.1} parent=1 // pred_region
      %26 = dma.done [#allocation5], 896
    $region9: #{value_net_forward_onehot.1} parent=1 // pred_fallthru
      _
    %v27 = vld [vmem:[#allocation4 + $0x10] sm:$0x1]
    %s28 = sld [smem:[#allocation3]]
    %s29 = scalar_lea.vmem [#allocation4], %s28
    %v30 = vld [vmem:[%s29] sm:$0x1]
    %s31 = sld [smem:[#allocation3 + $0x1]]
    %s32 = scalar_lea.vmem [#allocation4], %s31
    %v33 = vld [vmem:[%s32] sm:$0x1]
    %v35 = vrot.slane %v33, 7
    %vm37 = vcmask 1040384
    %v38 = vsel %vm37, %v30, %v35
    %v39 = vlaneseq
    %v40 = vshrl.u32 %v39, 7
    %v41 = vsub.s32 0, %v40
    %v42 = vrot.slane %v27, %v41
    %v43 = vadd.f32 %v38, %v42
    %v44 = vld [vmem:[#allocation4 + $0x30] sm:$0x1]
    %v45 = vld [vmem:[#allocation4 + $0x18] sm:$0xff]
    %v46 = vld [vmem:[#allocation4 + $0x20] sm:$0xff]
    %v47 = vld [vmem:[#allocation4 + $0x28] sm:$0xf]
    %v48 = vld [vmem:[#allocation4 + $0x31] sm:$0x1]
    %v49 = vld [vmem:[#allocation4 + $0x32] sm:$0x1]
    %vm50 = vcmask 156672
    %v51 = vsel %vm50, %v43, 0.0
    %52 = vadd.xlane.f32.xlu0 %v51
    %v53 = vpop.xlane.xlu0 %52
    %v54 = vrot.slane %v53, 4
    %v55 = vadd.f32 %v53, %v54
    %v56 = vrot.slane %v55, 2
    %v57 = vadd.f32 %v55, %v56
    %v58 = vrot.slane %v57, 1
    %v59 = vadd.f32 %v57, %v58
    %s60 = vtos %v59
    %v61 = vrcp.pop 20.0
    %s62 = vtos %v61
    %s63 = smul.f32 %s60, %s62
    %v64 = vstv %s63
    %v65 = vsub.f32 %v43, %v64
    %v66 = vmul.f32 %v65, %v65
    %v67 = vsel %vm50, %v66, 0.0
    %68 = vadd.xlane.f32.xlu0 %v67
    %v69 = vpop.xlane.xlu0 %68
    %v70 = vrot.slane %v69, 4
    %v71 = vadd.f32 %v69, %v70
    %v72 = vrot.slane %v71, 2
    %v73 = vadd.f32 %v71, %v72
    %v74 = vrot.slane %v73, 1
    %v75 = vadd.f32 %v73, %v74
    %s76 = vtos %v75
    %v77 = vrcp.pop 20.0
    %s78 = vtos %v77
    %s79 = smul.f32 %s76, %s78
    %v80 = vstv %s79
    %v81 = vrsqrt.pop %v80
    %v82 = vmul.f32 %v80, %v81
    %vm83 = vcmp.eq.f32.partialorder %v80, inf
    %v84 = vsel %vm83, %v80, %v82
    %vm85 = vcmp.eq.f32.partialorder %v80, 0.0
    %v86 = vand.u32 %v80, 2147483648
    %v87 = vsel %vm85, %v86, %v84
    %s88 = vtos %v87
    %s89 = sadd.f32 %s88, 1e-07
    %v90 = vstv %s89
    %v91 = vrcp.pop %v90
    %s92 = vtos %v91
    %v93 = vstv %s92
    %v94 = vmul.f32 %v65, %v93
    %v95 = vtanh.pop %v94
    %v96 = vlaneseq
    %v97 = vshrl.u32 %v96, 7
    %v98 = vsub.s32 0, %v97
    %v99 = vrot.slane %v44, %v98
    %vm100 = vcmask 162816
    %v102 = vsel %vm100, %v95, 0
    %vm104 = vcmask 1043456
    %v106 = vsel %vm104, %v47, 0
    %108 = vmatprep.subr.mxu0 0.0
    %109 = vmatpush1.msra.mxu0 %v45
    %110 = vmatprep.subr.mxu0 0.0
    %111 = vmatpush1.msra.mxu0 %v46
    %112 = vmatprep.subr.mxu0 0.0
    %113 = vmatpush1.msra.mxu0 %v106
    %114 = vmatprep.subr.mxu0 0.0
    %115 = vmatpush1.msra.mxu0 0.0
    %116 = vmatprep.subr.mxu0 0.0
    %117 = vmatpush1.msra.mxu0 0.0
    %118 = vmatprep.subr.mxu0 0.0
    %119 = vmatpush1.msra.mxu0 0.0
    %120 = vmatprep.subr.mxu0 0.0
    %121 = vmatpush1.msra.mxu0 0.0
    %122 = vmatprep.subr.mxu0 0.0
    %123 = vmatpush1.msra.mxu0 0.0
    %124 = vmatprep.subr.mxu0 0.0
    %125 = vmatpush1.msra.mxu0 0.0
    %126 = vmatprep.subr.mxu0 0.0
    %127 = vmatpush1.msra.mxu0 0.0
    %128 = vmatprep.subr.mxu0 0.0
    %129 = vmatpush1.msra.mxu0 0.0
    %130 = vmatprep.subr.mxu0 0.0
    %131 = vmatpush1.msra.mxu0 0.0
    %132 = vmatprep.subr.mxu0 0.0
    %133 = vmatpush1.msra.mxu0 0.0
    %134 = vmatprep.subr.mxu0 0.0
    %135 = vmatpush1.msra.mxu0 0.0
    %136 = vmatprep.subr.mxu0 0.0
    %137 = vmatpush1.msra.mxu0 0.0
    %138 = vmatprep.subr.mxu0 0.0
    %139 = vmatpush1.msra.mxu0 0.0
    %140 = vmatprep.subr.mxu0 0.0
    %141 = vmatpush1.msra.mxu0 0.0
    %142 = vmatprep.subr.mxu0 0.0
    %143 = vmatpush1.msra.mxu0 0.0
    %144 = vmatprep.subr.mxu0 0.0
    %145 = vmatpush1.msra.mxu0 0.0
    %146 = vmatprep.subr.mxu0 0.0
    %147 = vmatpush1.msra.mxu0 0.0
    %148 = vmatprep.subr.mxu0 0.0
    %149 = vmatpush1.msra.mxu0 0.0
    %150 = vmatprep.subr.mxu0 0.0
    %151 = vmatpush1.msra.mxu0 0.0
    %152 = vmatprep.subr.mxu0 0.0
    %153 = vmatpush1.msra.mxu0 0.0
    %154 = vmatprep.subr.mxu0 0.0
    %155 = vmatpush1.msra.mxu0 0.0
    %156 = vmatprep.subr.mxu0 0.0
    %157 = vmatpush1.msra.mxu0 0.0
    %158 = vmatprep.subr.mxu0 0.0
    %159 = vmatpush1.msra.mxu0 0.0
    %160 = vmatprep.subr.mxu0 0.0
    %161 = vmatpush1.msra.mxu0 0.0
    %162 = vmatprep.subr.mxu0 0.0
    %163 = vmatpush1.msra.mxu0 0.0
    %164 = vmatprep.subr.mxu0 0.0
    %165 = vmatpush1.msra.mxu0 0.0
    %166 = vmatprep.subr.mxu0 0.0
    %167 = vmatpush1.msra.mxu0 0.0
    %168 = vmatprep.subr.mxu0 0.0
    %169 = vmatpush1.msra.mxu0 0.0
    %170 = vmatprep.subr.mxu0 0.0
    %171 = vmatpush1.msra.mxu0 0.0
    %172 = vmatprep.mubr.f32.mxu0 0.0
    %173 = vmatmul.mubr.f32.gmra.mrb[0].mxu0 %v102
    %v174 = vpop.f32.mrb[0].mxu0
    %v175 = vadd.f32 %v99, %v174
    %v176 = vpop.f32.mrb[0].mxu0
    %177 = vdwg.mxu0
    %v178 = vtanh.pop %v175
    %v179 = vlaneseq
    %v180 = vshrl.u32 %v179, 7
    %v181 = vsub.s32 0, %v180
    %v182 = vrot.slane %v48, %v181
    %v183 = vmul.f32 %v178, %v182
    %vm184 = vcmask 320512
    %v185 = vsel %vm184, %v183, 0.0
    %186 = vadd.xlane.f32.xlu0 %v185
    %v187 = vpop.xlane.xlu0 %186
    %v188 = vlaneseq
    %v189 = vshrl.u32 %v188, 7
    %v190 = vsub.s32 0, %v189
    %v191 = vrot.slane %v49, %v190
    %v192 = vadd.f32 %v187, %v191
    %vm193 = vcmask 1024
    %194 = vst.msk [vmem:[%s2] sm:$0x3] %vm193, %v192
    // Predicated region
    $region10: #{value_net_forward_onehot.1} parent=1 // pred_check
      _
    $region11: #{value_net_forward_onehot.1} parent=1 // pred_check_branch
      %196 = sbr.rel (0) target = $region13
    $region12: #{value_net_forward_onehot.1} parent=1 // pred_region
      _
    $region13: #{value_net_forward_onehot.1} parent=1 // pred_fallthru
      _
    // Predicated region
    $region14: #{value_net_forward_onehot.1} parent=1 // pred_check
      _
    $region15: #{value_net_forward_onehot.1} parent=1 // pred_check_branch
      %198 = sbr.rel (0) target = $region17
    $region16: #{value_net_forward_onehot.1} parent=1 // pred_region
      _
    $region17: #{value_net_forward_onehot.1} parent=1 // pred_fallthru
      _
    %199 = vsyncpa [#allocation5], 1

</llo_original>
